<compile_context>
chip_gen: v7x
topology: tpu7x:2x2x1
jax: 0.10.0
libtpu: 0.0.40
codegen_flags: <defaults>
</compile_context>

<pallas_src>
import functools

import jax
import jax.numpy as jnp
from jax.experimental import pallas as pl
from jax.experimental.pallas import tpu as pltpu


def _round_up(x, m):
    return ((x + m - 1) // m) * m


# ---------------------------------------------------------------------------
# Fused kernel: entire GraphEncoder forward in one body (gridless, 4 inputs)
# ---------------------------------------------------------------------------
def graph_encoder_kernel(layout, a_ref, x_ref, pool_a_ref, w_ref, o_ref):
    f32 = jnp.float32

    def wslice(name):
        row, nrows, ncols = layout[name]           # static Python ints
        return w_ref[row:row + nrows, 0:ncols]     # static slice: free

    a = a_ref[...]                                 # (N, N) normalized adjacency

    # conv1 + relu :  A_norm @ (X @ W1) + b1
    h = jnp.dot(x_ref[...], wslice('w1'), preferred_element_type=f32)
    h = jnp.maximum(jnp.dot(a, h, preferred_element_type=f32) + wslice('b1'), 0.0)

    # conv2 + relu
    h = jnp.dot(h, wslice('w2'), preferred_element_type=f32)
    h = jnp.maximum(jnp.dot(a, h, preferred_element_type=f32) + wslice('b2'), 0.0)

    # conv3 + global_mean_pool + mol_hidden1 (all folded):
    #   pool @ (A (h W3) + b3) @ Wh1 + bh1  ==  ((pool @ A) h) @ (W3 Wh1) + (b3 Wh1 + bh1)
    pooled = jnp.dot(pool_a_ref[...], h, preferred_element_type=f32)
    t = jnp.maximum(
        jnp.dot(pooled, wslice('w3h1'), preferred_element_type=f32) + wslice('bfold'),
        0.0)

    # mol_hidden2 (lane-padded output columns -> full unmasked store)
    o_ref[...] = jnp.dot(t, wslice('wh2'), preferred_element_type=f32) + wslice('bh2')


# ---------------------------------------------------------------------------
# One-time parameter preparation (folding + packing into one aligned slab)
# ---------------------------------------------------------------------------
def _pack_slab(named_arrays):
    """Pack 2-D f32 arrays into one (8,128)-aligned slab; returns (slab, layout)."""
    width = 128 * max(_round_up(a.shape[1], 128) // 128 for _, a in named_arrays)
    layout = {}
    pieces = []
    row = 0
    for name, arr in named_arrays:
        r, c = arr.shape
        r_pad = _round_up(r, 8)
        layout[name] = (row, r, c)
        block = jnp.zeros((r_pad, width), jnp.float32).at[:r, :c].set(
            arr.astype(jnp.float32))
        pieces.append(block)
        row += r_pad
    return jnp.concatenate(pieces, axis=0), layout


def prepare_params(p):
    """Fold conv3 into mol_hidden1 and pack everything into one weight slab."""
    hi = jax.lax.Precision.HIGHEST
    w3h1 = jnp.dot(p['w_conv3'], p['w_h1'], precision=hi)            # (H, nhid)
    bfold = jnp.dot(p['b_conv3'], p['w_h1'], precision=hi) + p['b_h1']  # (1, nhid)

    nhid, nout = p['w_h2'].shape
    lane_pad = _round_up(nout, 128)
    wh2_pad = jnp.zeros((nhid, lane_pad), jnp.float32).at[:, :nout].set(p['w_h2'])
    bh2_pad = jnp.zeros((1, lane_pad), jnp.float32).at[:, :nout].set(p['b_h2'])

    slab, layout = _pack_slab([
        ('w1', p['w_conv1']), ('b1', p['b_conv1']),
        ('w2', p['w_conv2']), ('b2', p['b_conv2']),
        ('w3h1', w3h1), ('bfold', bfold),
        ('wh2', wh2_pad), ('bh2', bh2_pad),
    ])
    return slab, layout, lane_pad, nout


# ---------------------------------------------------------------------------
# Forward wrapper (layout / static metadata bound via functools.partial)
# ---------------------------------------------------------------------------
def graph_encoder(slab, node_x, a_norm, pool_mat, *, layout, lane_pad, nout):
    num_graphs, num_nodes = pool_mat.shape
    num_feat = node_x.shape[1]
    ghid = layout['w2'][2]
    nhid = layout['w3h1'][2]
    b_pad = _round_up(num_graphs, 8)

    # Data-dependent per-call prep: pad pool rows to a sublane multiple and
    # fold the last adjacency application into it (purely structural).
    pool_pad = jnp.zeros((b_pad, num_nodes), jnp.float32).at[:num_graphs, :].set(pool_mat)
    pool_a = jnp.dot(pool_pad, a_norm, precision=jax.lax.Precision.HIGHEST)

    flops = 2 * (num_nodes * num_feat * ghid      # X @ W1
                 + num_nodes * num_nodes * ghid   # A @ .
                 + num_nodes * ghid * ghid        # h @ W2
                 + num_nodes * num_nodes * ghid   # A @ .
                 + b_pad * num_nodes * ghid       # pool_a @ h
                 + b_pad * ghid * nhid            # . @ (W3 Wh1)
                 + b_pad * nhid * lane_pad)       # . @ Wh2
    bytes_accessed = 4 * (a_norm.size + node_x.size + pool_a.size
                          + slab.size + b_pad * lane_pad)

    out_pad = pl.pallas_call(
        functools.partial(graph_encoder_kernel, layout),
        out_shape=jax.ShapeDtypeStruct((b_pad, lane_pad), jnp.float32),
        in_specs=[pl.BlockSpec(memory_space=pltpu.MemorySpace.VMEM)] * 4,
        out_specs=pl.BlockSpec(memory_space=pltpu.MemorySpace.VMEM),
        cost_estimate=pl.CostEstimate(flops=int(flops), transcendentals=0,
                                      bytes_accessed=int(bytes_accessed)),
    )(a_norm, node_x, pool_a, slab)
    return out_pad[:num_graphs, :nout]


# Pure-JAX reference (mirrors the PyTorch forward) for a numerical check.
def graph_encoder_ref(p, node_x, a_norm, pool_mat):
    h = jnp.maximum(a_norm @ (node_x @ p['w_conv1']) + p['b_conv1'], 0.0)
    h = jnp.maximum(a_norm @ (h @ p['w_conv2']) + p['b_conv2'], 0.0)
    h = a_norm @ (h @ p['w_conv3']) + p['b_conv3']
    pooled = pool_mat @ h
    h1 = jnp.maximum(pooled @ p['w_h1'] + p['b_h1'], 0.0)
    return h1 @ p['w_h2'] + p['b_h2']


# ---------------------------------------------------------------------------
# Deterministic parameter / input construction
# ---------------------------------------------------------------------------
def make_params(key, num_node_features, graph_hidden, nhid, nout):
    ks = jax.random.split(key, 8)
    gn = lambda k, s, scale=0.1: (scale * jax.random.normal(k, s)).astype(jnp.float32)
    return {
        'w_conv1': gn(ks[0], (num_node_features, graph_hidden)),
        'b_conv1': jnp.zeros((1, graph_hidden), jnp.float32),
        'w_conv2': gn(ks[1], (graph_hidden, graph_hidden)),
        'b_conv2': jnp.zeros((1, graph_hidden), jnp.float32),
        'w_conv3': gn(ks[2], (graph_hidden, graph_hidden)),
        'b_conv3': jnp.zeros((1, graph_hidden), jnp.float32),
        'w_h1': gn(ks[3], (graph_hidden, nhid)),
        'b_h1': gn(ks[4], (1, nhid), 0.01),
        'w_h2': gn(ks[5], (nhid, nout)),
        'b_h2': gn(ks[6], (1, nout), 0.01),
    }


def make_graph(num_nodes, num_graphs):
    """Chain graph per sub-graph; returns GCN-normalized dense adjacency + mean-pool matrix."""
    per = num_nodes // num_graphs
    src = jnp.concatenate([jnp.arange(num_nodes - 1), jnp.arange(1, num_nodes)])
    dst = jnp.concatenate([jnp.arange(1, num_nodes), jnp.arange(num_nodes - 1)])
    keep = (src // per) == (dst // per)              # no edges across sub-graphs
    A = jnp.zeros((num_nodes, num_nodes), jnp.float32).at[src, dst].set(
        keep.astype(jnp.float32))
    A_hat = A + jnp.eye(num_nodes, dtype=jnp.float32)
    deg = jnp.sum(A_hat, axis=1)
    dinv = 1.0 / jnp.sqrt(deg)
    a_norm = A_hat * dinv[:, None] * dinv[None, :]
    batch = jnp.arange(num_nodes) // per
    pool = (batch[None, :] == jnp.arange(num_graphs)[:, None]).astype(jnp.float32)
    pool = pool / jnp.sum(pool, axis=1, keepdims=True)   # (B, N) mean-pool matrix
    return a_norm, pool


# ---------------------------------------------------------------------------
if __name__ == "__main__":
    NUM_NODE_FEATURES = 8
    GRAPH_HIDDEN = 32
    NHID = 32
    NOUT = 32
    NUM_NODES = 16
    NUM_GRAPHS = 2

    key = jax.random.PRNGKey(0)
    k_params, k_x = jax.random.split(key, 2)

    params = make_params(k_params, NUM_NODE_FEATURES, GRAPH_HIDDEN, NHID, NOUT)
    node_x = jax.random.normal(k_x, (NUM_NODES, NUM_NODE_FEATURES)).astype(jnp.float32)
    a_norm, pool_mat = make_graph(NUM_NODES, NUM_GRAPHS)

    # One-time parameter prep (folding + slab packing) -- outside the hot path.
    slab, layout, lane_pad, nout = prepare_params(params)

    fwd = jax.jit(functools.partial(graph_encoder,
                                    layout=layout, lane_pad=lane_pad, nout=nout))
    graph_encoded = fwd(slab, node_x, a_norm, pool_mat)
    jax.block_until_ready(graph_encoded)

    ref = graph_encoder_ref(params, node_x, a_norm, pool_mat)
    assert graph_encoded.shape == (NUM_GRAPHS, NOUT)
    assert jnp.allclose(graph_encoded, ref, atol=2e-3, rtol=2e-3)
    print("KERNEL_OK")
</pallas_src>

<mosaic_0001>
module attributes {stable_mosaic.version = 11 : i64} {
  func.func @graph_encoder_kernel(%arg0: memref<16x16xf32, #tpu.memory_space<vmem>>, %arg1: memref<16x8xf32, #tpu.memory_space<vmem>>, %arg2: memref<8x16xf32, #tpu.memory_space<vmem>>, %arg3: memref<136x128xf32, #tpu.memory_space<vmem>>, %arg4: memref<8x128xf32, #tpu.memory_space<vmem>>) attributes {dimension_semantics = [], scalar_prefetch = 0 : i64, scratch_operands = 0 : i64, tpu.core_type = #tpu.core_type<tc>} {
    %c0 = arith.constant 0 : index
    %c0_0 = arith.constant 0 : index
    %0 = vector.load %arg0[%c0, %c0_0] : memref<16x16xf32, #tpu.memory_space<vmem>>, vector<16x16xf32>
    %c0_1 = arith.constant 0 : index
    %c0_2 = arith.constant 0 : index
    %1 = vector.load %arg1[%c0_1, %c0_2] : memref<16x8xf32, #tpu.memory_space<vmem>>, vector<16x8xf32>
    %c0_3 = arith.constant 0 : index
    %c0_4 = arith.constant 0 : index
    %2 = vector.load %arg3[%c0_3, %c0_4] : memref<136x128xf32, #tpu.memory_space<vmem>>, vector<8x32xf32>
    %cst = arith.constant dense<0.000000e+00> : vector<16x32xf32>
    %3 = tpu.matmul %1, %2, %cst {dimension_numbers = #tpu.dot_dimension_numbers<[1], [0], [0], [1], [0, 0, 1, 1], [], []>} : vector<16x8xf32>, vector<8x32xf32>, vector<16x32xf32> -> vector<16x32xf32>
    %cst_5 = arith.constant dense<0.000000e+00> : vector<16x32xf32>
    %4 = tpu.matmul %0, %3, %cst_5 {dimension_numbers = #tpu.dot_dimension_numbers<[1], [0], [0], [1], [0, 0, 1, 1], [], []>} : vector<16x16xf32>, vector<16x32xf32>, vector<16x32xf32> -> vector<16x32xf32>
    %c8 = arith.constant 8 : index
    %c0_6 = arith.constant 0 : index
    %5 = vector.load %arg3[%c8, %c0_6] : memref<136x128xf32, #tpu.memory_space<vmem>>, vector<1x32xf32>
    %6 = vector.broadcast %5 : vector<1x32xf32> to vector<16x32xf32>
    %7 = arith.addf %4, %6 : vector<16x32xf32>
    %cst_7 = arith.constant 0.000000e+00 : f32
    %8 = vector.broadcast %cst_7 : f32 to vector<16x32xf32>
    %9 = arith.maximumf %7, %8 : vector<16x32xf32>
    %c16 = arith.constant 16 : index
    %c0_8 = arith.constant 0 : index
    %10 = vector.load %arg3[%c16, %c0_8] : memref<136x128xf32, #tpu.memory_space<vmem>>, vector<32x32xf32>
    %cst_9 = arith.constant dense<0.000000e+00> : vector<16x32xf32>
    %11 = tpu.matmul %9, %10, %cst_9 {dimension_numbers = #tpu.dot_dimension_numbers<[1], [0], [0], [1], [0, 0, 1, 1], [], []>} : vector<16x32xf32>, vector<32x32xf32>, vector<16x32xf32> -> vector<16x32xf32>
    %cst_10 = arith.constant dense<0.000000e+00> : vector<16x32xf32>
    %12 = tpu.matmul %0, %11, %cst_10 {dimension_numbers = #tpu.dot_dimension_numbers<[1], [0], [0], [1], [0, 0, 1, 1], [], []>} : vector<16x16xf32>, vector<16x32xf32>, vector<16x32xf32> -> vector<16x32xf32>
    %c48 = arith.constant 48 : index
    %c0_11 = arith.constant 0 : index
    %13 = vector.load %arg3[%c48, %c0_11] : memref<136x128xf32, #tpu.memory_space<vmem>>, vector<1x32xf32>
    %14 = vector.broadcast %13 : vector<1x32xf32> to vector<16x32xf32>
    %15 = arith.addf %12, %14 : vector<16x32xf32>
    %cst_12 = arith.constant 0.000000e+00 : f32
    %16 = vector.broadcast %cst_12 : f32 to vector<16x32xf32>
    %17 = arith.maximumf %15, %16 : vector<16x32xf32>
    %c0_13 = arith.constant 0 : index
    %c0_14 = arith.constant 0 : index
    %18 = vector.load %arg2[%c0_13, %c0_14] : memref<8x16xf32, #tpu.memory_space<vmem>>, vector<8x16xf32>
    %cst_15 = arith.constant dense<0.000000e+00> : vector<8x32xf32>
    %19 = tpu.matmul %18, %17, %cst_15 {dimension_numbers = #tpu.dot_dimension_numbers<[1], [0], [0], [1], [0, 0, 1, 1], [], []>} : vector<8x16xf32>, vector<16x32xf32>, vector<8x32xf32> -> vector<8x32xf32>
    %c56 = arith.constant 56 : index
    %c0_16 = arith.constant 0 : index
    %20 = vector.load %arg3[%c56, %c0_16] : memref<136x128xf32, #tpu.memory_space<vmem>>, vector<32x32xf32>
    %cst_17 = arith.constant dense<0.000000e+00> : vector<8x32xf32>
    %21 = tpu.matmul %19, %20, %cst_17 {dimension_numbers = #tpu.dot_dimension_numbers<[1], [0], [0], [1], [0, 0, 1, 1], [], []>} : vector<8x32xf32>, vector<32x32xf32>, vector<8x32xf32> -> vector<8x32xf32>
    %c88 = arith.constant 88 : index
    %c0_18 = arith.constant 0 : index
    %22 = vector.load %arg3[%c88, %c0_18] : memref<136x128xf32, #tpu.memory_space<vmem>>, vector<1x32xf32>
    %23 = vector.broadcast %22 : vector<1x32xf32> to vector<8x32xf32>
    %24 = arith.addf %21, %23 : vector<8x32xf32>
    %cst_19 = arith.constant 0.000000e+00 : f32
    %25 = vector.broadcast %cst_19 : f32 to vector<8x32xf32>
    %26 = arith.maximumf %24, %25 : vector<8x32xf32>
    %c96 = arith.constant 96 : index
    %c0_20 = arith.constant 0 : index
    %27 = vector.load %arg3[%c96, %c0_20] : memref<136x128xf32, #tpu.memory_space<vmem>>, vector<32x128xf32>
    %cst_21 = arith.constant dense<0.000000e+00> : vector<8x128xf32>
    %28 = tpu.matmul %26, %27, %cst_21 {dimension_numbers = #tpu.dot_dimension_numbers<[1], [0], [0], [1], [0, 0, 1, 1], [], []>} : vector<8x32xf32>, vector<32x128xf32>, vector<8x128xf32> -> vector<8x128xf32>
    %c128 = arith.constant 128 : index
    %c0_22 = arith.constant 0 : index
    %29 = vector.load %arg3[%c128, %c0_22] : memref<136x128xf32, #tpu.memory_space<vmem>>, vector<1x128xf32>
    %30 = vector.broadcast %29 : vector<1x128xf32> to vector<8x128xf32>
    %31 = arith.addf %28, %30 : vector<8x128xf32>
    %c0_23 = arith.constant 0 : index
    %c0_24 = arith.constant 0 : index
    %32 = vector.load %arg4[%c0_23, %c0_24] : memref<8x128xf32, #tpu.memory_space<vmem>>, vector<8x128xf32>
    tpu.vector_store %arg4[%c0_23, %c0_24], %31 {strides = array<i32>} : memref<8x128xf32, #tpu.memory_space<vmem>>, vector<8x128xf32>,
    return
  }
}

</mosaic_0001>

<llo_original>
// kernel: graph_encoder.1
$region0: #{graph_encoder.1}
  #allocation0 [shape = 'u32[]', space=smem, size = 0x4, offset = 0x4, fixed_abs, tag = 'smem constant byte address 0x4 - core index']
  #allocation1 [shape = 'u32[144,128]{1,0:T(1,128)}', space=vmem, size = 0x12000, scoped, tag = 'internal scratch']
  %s0 = inlined_call_operand.vmem [shape: f32[16,16], index: 0, kind: input, shape index: {}]
  %s1 = inlined_call_operand.vmem [shape: f32[16,8], index: 1, kind: input, shape index: {}]
  %s2 = inlined_call_operand.vmem [shape: f32[8,16], index: 2, kind: input, shape index: {}]
  %s3 = inlined_call_operand.hbm [shape: f32[136,128], index: 3, kind: input, shape index: {}]
  %s4 = inlined_call_operand.vmem [shape: f32[8,128], index: 4, kind: output, shape index: {}]
  %s5 = sld [smem:[#allocation0]]
  $region30: #{graph_encoder.1} parent=0
    _
  %s7 = ssub.s32 1, %s5
  %s8 = scalar_select 0, %s7, %s5
  $region1: #{graph_encoder.1} parent=0
    #allocation2 [shape = 'u8[69632]{0}', space=vmem, size = 0x11000, scoped, tag = 'input window, operand 3, single buffered']
    #allocation3 [shape = 's32[1]{0}', space=sflag, size = 0x4, scoped, tag = 'scoped memory for graph_encoder.1']
    %9 = vsyncpa [#allocation3], 0
    // Predicated region
    $region2: #{graph_encoder.1} parent=1 // pred_check
      _
    $region3: #{graph_encoder.1} parent=1 // pred_check_branch
      %11 = sbr.rel (0) target = $region5
    $region4: #{graph_encoder.1} parent=1 // pred_region
      _
    $region5: #{graph_encoder.1} parent=1 // pred_fallthru
      _
    // Predicated region
    $region6: #{graph_encoder.1} parent=1 // pred_check
      _
    $region7: #{graph_encoder.1} parent=1 // pred_check_branch
      %13 = sbr.rel (0) target = $region9
    $region8: #{graph_encoder.1} parent=1 // pred_region
      _
    $region9: #{graph_encoder.1} parent=1 // pred_fallthru
      _
    // Predicated region
    $region10: #{graph_encoder.1} parent=1 // pred_check
      _
    $region11: #{graph_encoder.1} parent=1 // pred_check_branch
      %15 = sbr.rel (0) target = $region13
    $region12: #{graph_encoder.1} parent=1 // pred_region
      _
    $region13: #{graph_encoder.1} parent=1 // pred_fallthru
      _
    // Predicated region
    $region14: #{graph_encoder.1} parent=1 // pred_check
      _
    $region15: #{graph_encoder.1} parent=1 // pred_check_branch
      %17 = sbr.rel (0) target = $region17
    $region16: #{graph_encoder.1} parent=1 // pred_region
      %s19 = ssub.s32 2176, 2176
      %20 = vsyncadd [#allocation3], %s19
      %s21 = sshll.u32 [#allocation2], 4
      %s22 = int_to_ptr.vmem [resolvable:$true] %s21
      %27 = dma.hbm_to_vmem [thread:$0]  %s3, 2176, %s22, [#allocation3], 128, 128, 8
    $region17: #{graph_encoder.1} parent=1 // pred_fallthru
      _
    // Predicated region
    $region18: #{graph_encoder.1} parent=1 // pred_check
      _
    $region19: #{graph_encoder.1} parent=1 // pred_check_branch
      %29 = sbr.rel (0) target = $region21
    $region20: #{graph_encoder.1} parent=1 // pred_region
      %30 = dma.done [#allocation3], 2176
    $region21: #{graph_encoder.1} parent=1 // pred_fallthru
      _
    %v31 = vld [vmem:[%s0] sm:$0xff]
    %v32 = vld [vmem:[%s0 + $0x8] sm:$0xff]
    %v33 = vld [vmem:[%s1] sm:$0xff]
    %v34 = vld [vmem:[%s1 + $0x8] sm:$0xff]
    %v35 = vld [vmem:[#allocation2] sm:$0xff]
    %vm36 = vcmask 64512
    %v38 = vsel %vm36, %v33, 0
    %v41 = vsel %vm36, %v34, 0
    %43 = vmatprep.subr.mxu0 0.0
    %44 = vmatpush1.msra.mxu0 %v35
    %45 = vmatprep.subr.mxu0 0.0
    %46 = vmatpush1.msra.mxu0 0.0
    %47 = vmatprep.subr.mxu0 0.0
    %48 = vmatpush1.msra.mxu0 0.0
    %49 = vmatprep.subr.mxu0 0.0
    %50 = vmatpush1.msra.mxu0 0.0
    %51 = vmatprep.subr.mxu0 0.0
    %52 = vmatpush1.msra.mxu0 0.0
    %53 = vmatprep.subr.mxu0 0.0
    %54 = vmatpush1.msra.mxu0 0.0
    %55 = vmatprep.subr.mxu0 0.0
    %56 = vmatpush1.msra.mxu0 0.0
    %57 = vmatprep.subr.mxu0 0.0
    %58 = vmatpush1.msra.mxu0 0.0
    %59 = vmatprep.subr.mxu0 0.0
    %60 = vmatpush1.msra.mxu0 0.0
    %61 = vmatprep.subr.mxu0 0.0
    %62 = vmatpush1.msra.mxu0 0.0
    %63 = vmatprep.subr.mxu0 0.0
    %64 = vmatpush1.msra.mxu0 0.0
    %65 = vmatprep.subr.mxu0 0.0
    %66 = vmatpush1.msra.mxu0 0.0
    %67 = vmatprep.subr.mxu0 0.0
    %68 = vmatpush1.msra.mxu0 0.0
    %69 = vmatprep.subr.mxu0 0.0
    %70 = vmatpush1.msra.mxu0 0.0
    %71 = vmatprep.subr.mxu0 0.0
    %72 = vmatpush1.msra.mxu0 0.0
    %73 = vmatprep.subr.mxu0 0.0
    %74 = vmatpush1.msra.mxu0 0.0
    %75 = vmatprep.subr.mxu0 0.0
    %76 = vmatpush1.msra.mxu0 0.0
    %77 = vmatprep.subr.mxu0 0.0
    %78 = vmatpush1.msra.mxu0 0.0
    %79 = vmatprep.subr.mxu0 0.0
    %80 = vmatpush1.msra.mxu0 0.0
    %81 = vmatprep.subr.mxu0 0.0
    %82 = vmatpush1.msra.mxu0 0.0
    %83 = vmatprep.subr.mxu0 0.0
    %84 = vmatpush1.msra.mxu0 0.0
    %85 = vmatprep.subr.mxu0 0.0
    %86 = vmatpush1.msra.mxu0 0.0
    %87 = vmatprep.subr.mxu0 0.0
    %88 = vmatpush1.msra.mxu0 0.0
    %89 = vmatprep.subr.mxu0 0.0
    %90 = vmatpush1.msra.mxu0 0.0
    %91 = vmatprep.subr.mxu0 0.0
    %92 = vmatpush1.msra.mxu0 0.0
    %93 = vmatprep.subr.mxu0 0.0
    %94 = vmatpush1.msra.mxu0 0.0
    %95 = vmatprep.subr.mxu0 0.0
    %96 = vmatpush1.msra.mxu0 0.0
    %97 = vmatprep.subr.mxu0 0.0
    %98 = vmatpush1.msra.mxu0 0.0
    %99 = vmatprep.subr.mxu0 0.0
    %100 = vmatpush1.msra.mxu0 0.0
    %101 = vmatprep.subr.mxu0 0.0
    %102 = vmatpush1.msra.mxu0 0.0
    %103 = vmatprep.subr.mxu0 0.0
    %104 = vmatpush1.msra.mxu0 0.0
    %105 = vmatprep.subr.mxu0 0.0
    %106 = vmatpush1.msra.mxu0 0.0
    %107 = vmatprep.mubr.f32.mxu0 0.0
    %108 = vmatmul.mubr.f32.gmra.mrb[0].mxu0 %v38
    %v109 = vpop.f32.mrb[0].mxu0
    %v110 = vadd.f32 0.0, %v109
    %v111 = vpop.f32.mrb[0].mxu0
    %112 = vmatprep.mubr.f32.mxu0 0.0
    %113 = vmatmul.mubr.f32.gmra.mrb[0].mxu0 %v41
    %v114 = vpop.f32.mrb[0].mxu0
    %v115 = vadd.f32 0.0, %v114
    %v116 = vpop.f32.mrb[0].mxu0
    %117 = vdwg.mxu0
    %v118 = vld [vmem:[#allocation2 + $0x8] sm:$0x1]
    %v119 = vlaneseq
    %v120 = vshrl.u32 %v119, 7
    %v121 = vsub.s32 0, %v120
    %v122 = vrot.slane %v118, %v121
    %vm123 = vcmask 130048
    %v125 = vsel %vm123, %v31, 0
    %v128 = vsel %vm123, %v32, 0
    %130 = vmatprep.subr.mxu0 0.0
    %131 = vmatpush1.msra.mxu0 %v110
    %132 = vmatprep.subr.mxu0 0.0
    %133 = vmatpush1.msra.mxu0 %v115
    %134 = vmatprep.subr.mxu0 0.0
    %135 = vmatpush1.msra.mxu0 0.0
    %136 = vmatprep.subr.mxu0 0.0
    %137 = vmatpush1.msra.mxu0 0.0
    %138 = vmatprep.subr.mxu0 0.0
    %139 = vmatpush1.msra.mxu0 0.0
    %140 = vmatprep.subr.mxu0 0.0
    %141 = vmatpush1.msra.mxu0 0.0
    %142 = vmatprep.subr.mxu0 0.0
    %143 = vmatpush1.msra.mxu0 0.0
    %144 = vmatprep.subr.mxu0 0.0
    %145 = vmatpush1.msra.mxu0 0.0
    %146 = vmatprep.subr.mxu0 0.0
    %147 = vmatpush1.msra.mxu0 0.0
    %148 = vmatprep.subr.mxu0 0.0
    %149 = vmatpush1.msra.mxu0 0.0
    %150 = vmatprep.subr.mxu0 0.0
    %151 = vmatpush1.msra.mxu0 0.0
    %152 = vmatprep.subr.mxu0 0.0
    %153 = vmatpush1.msra.mxu0 0.0
    %154 = vmatprep.subr.mxu0 0.0
    %155 = vmatpush1.msra.mxu0 0.0
    %156 = vmatprep.subr.mxu0 0.0
    %157 = vmatpush1.msra.mxu0 0.0
    %158 = vmatprep.subr.mxu0 0.0
    %159 = vmatpush1.msra.mxu0 0.0
    %160 = vmatprep.subr.mxu0 0.0
    %161 = vmatpush1.msra.mxu0 0.0
    %162 = vmatprep.subr.mxu0 0.0
    %163 = vmatpush1.msra.mxu0 0.0
    %164 = vmatprep.subr.mxu0 0.0
    %165 = vmatpush1.msra.mxu0 0.0
    %166 = vmatprep.subr.mxu0 0.0
    %167 = vmatpush1.msra.mxu0 0.0
    %168 = vmatprep.subr.mxu0 0.0
    %169 = vmatpush1.msra.mxu0 0.0
    %170 = vmatprep.subr.mxu0 0.0
    %171 = vmatpush1.msra.mxu0 0.0
    %172 = vmatprep.subr.mxu0 0.0
    %173 = vmatpush1.msra.mxu0 0.0
    %174 = vmatprep.subr.mxu0 0.0
    %175 = vmatpush1.msra.mxu0 0.0
    %176 = vmatprep.subr.mxu0 0.0
    %177 = vmatpush1.msra.mxu0 0.0
    %178 = vmatprep.subr.mxu0 0.0
    %179 = vmatpush1.msra.mxu0 0.0
    %180 = vmatprep.subr.mxu0 0.0
    %181 = vmatpush1.msra.mxu0 0.0
    %182 = vmatprep.subr.mxu0 0.0
    %183 = vmatpush1.msra.mxu0 0.0
    %184 = vmatprep.subr.mxu0 0.0
    %185 = vmatpush1.msra.mxu0 0.0
    %186 = vmatprep.subr.mxu0 0.0
    %187 = vmatpush1.msra.mxu0 0.0
    %188 = vmatprep.subr.mxu0 0.0
    %189 = vmatpush1.msra.mxu0 0.0
    %190 = vmatprep.subr.mxu0 0.0
    %191 = vmatpush1.msra.mxu0 0.0
    %192 = vmatprep.subr.mxu0 0.0
    %193 = vmatpush1.msra.mxu0 0.0
    %194 = vmatprep.mubr.f32.mxu0 0.0
    %195 = vmatmul.mubr.f32.gmra.mrb[0].mxu0 %v125
    %v196 = vpop.f32.mrb[0].mxu0
    %v197 = vadd.f32 %v122, %v196
    %v198 = vpop.f32.mrb[0].mxu0
    %199 = vmatprep.mubr.f32.mxu0 0.0
    %200 = vmatmul.mubr.f32.gmra.mrb[0].mxu0 %v128
    %v201 = vpop.f32.mrb[0].mxu0
    %v202 = vadd.f32 %v122, %v201
    %v203 = vpop.f32.mrb[0].mxu0
    %204 = vdwg.mxu0
    %v205 = vmax.f32 %v197, 0.0
    %v206 = vmax.f32 %v202, 0.0
    %v207 = vld [vmem:[#allocation2 + $0x10] sm:$0xff]
    %v208 = vld [vmem:[#allocation2 + $0x18] sm:$0xff]
    %v209 = vld [vmem:[#allocation2 + $0x20] sm:$0xff]
    %v210 = vld [vmem:[#allocation2 + $0x28] sm:$0xff]
    %vm211 = vcmask 261120
    %v213 = vsel %vm211, %v205, 0
    %v216 = vsel %vm211, %v206, 0
    %218 = vmatprep.subr.mxu0 0.0
    %219 = vmatpush1.msra.mxu0 %v207
    %220 = vmatprep.subr.mxu0 0.0
    %221 = vmatpush1.msra.mxu0 %v208
    %222 = vmatprep.subr.mxu0 0.0
    %223 = vmatpush1.msra.mxu0 %v209
    %224 = vmatprep.subr.mxu0 0.0
    %225 = vmatpush1.msra.mxu0 %v210
    %226 = vmatprep.subr.mxu0 0.0
    %227 = vmatpush1.msra.mxu0 0.0
    %228 = vmatprep.subr.mxu0 0.0
    %229 = vmatpush1.msra.mxu0 0.0
    %230 = vmatprep.subr.mxu0 0.0
    %231 = vmatpush1.msra.mxu0 0.0
    %232 = vmatprep.subr.mxu0 0.0
    %233 = vmatpush1.msra.mxu0 0.0
    %234 = vmatprep.subr.mxu0 0.0
    %235 = vmatpush1.msra.mxu0 0.0
    %236 = vmatprep.subr.mxu0 0.0
    %237 = vmatpush1.msra.mxu0 0.0
    %238 = vmatprep.subr.mxu0 0.0
    %239 = vmatpush1.msra.mxu0 0.0
    %240 = vmatprep.subr.mxu0 0.0
    %241 = vmatpush1.msra.mxu0 0.0
    %242 = vmatprep.subr.mxu0 0.0
    %243 = vmatpush1.msra.mxu0 0.0
    %244 = vmatprep.subr.mxu0 0.0
    %245 = vmatpush1.msra.mxu0 0.0
    %246 = vmatprep.subr.mxu0 0.0
    %247 = vmatpush1.msra.mxu0 0.0
    %248 = vmatprep.subr.mxu0 0.0
    %249 = vmatpush1.msra.mxu0 0.0
    %250 = vmatprep.subr.mxu0 0.0
    %251 = vmatpush1.msra.mxu0 0.0
    %252 = vmatprep.subr.mxu0 0.0
    %253 = vmatpush1.msra.mxu0 0.0
    %254 = vmatprep.subr.mxu0 0.0
    %255 = vmatpush1.msra.mxu0 0.0
    %256 = vmatprep.subr.mxu0 0.0
    %257 = vmatpush1.msra.mxu0 0.0
    %258 = vmatprep.subr.mxu0 0.0
    %259 = vmatpush1.msra.mxu0 0.0
    %260 = vmatprep.subr.mxu0 0.0
    %261 = vmatpush1.msra.mxu0 0.0
    %262 = vmatprep.subr.mxu0 0.0
    %263 = vmatpush1.msra.mxu0 0.0
    %264 = vmatprep.subr.mxu0 0.0
    %265 = vmatpush1.msra.mxu0 0.0
    %266 = vmatprep.subr.mxu0 0.0
    %267 = vmatpush1.msra.mxu0 0.0
    %268 = vmatprep.subr.mxu0 0.0
    %269 = vmatpush1.msra.mxu0 0.0
    %270 = vmatprep.subr.mxu0 0.0
    %271 = vmatpush1.msra.mxu0 0.0
    %272 = vmatprep.subr.mxu0 0.0
    %273 = vmatpush1.msra.mxu0 0.0
    %274 = vmatprep.subr.mxu0 0.0
    %275 = vmatpush1.msra.mxu0 0.0
    %276 = vmatprep.subr.mxu0 0.0
    %277 = vmatpush1.msra.mxu0 0.0
    %278 = vmatprep.subr.mxu0 0.0
    %279 = vmatpush1.msra.mxu0 0.0
    %280 = vmatprep.subr.mxu0 0.0
    %281 = vmatpush1.msra.mxu0 0.0
    %282 = vmatprep.mubr.f32.mxu0 0.0
    %283 = vmatmul.mubr.f32.gmra.mrb[0].mxu0 %v213
    %v284 = vpop.f32.mrb[0].mxu0
    %v285 = vadd.f32 0.0, %v284
    %v286 = vpop.f32.mrb[0].mxu0
    %287 = vmatprep.mubr.f32.mxu0 0.0
    %288 = vmatmul.mubr.f32.gmra.mrb[0].mxu0 %v216
    %v289 = vpop.f32.mrb[0].mxu0
    %v290 = vadd.f32 0.0, %v289
    %v291 = vpop.f32.mrb[0].mxu0
    %292 = vdwg.mxu0
    %v293 = vld [vmem:[#allocation2 + $0x30] sm:$0x1]
    %v294 = vlaneseq
    %v295 = vshrl.u32 %v294, 7
    %v296 = vsub.s32 0, %v295
    %v297 = vrot.slane %v293, %v296
    %298 = vmatprep.subr.mxu0 0.0
    %299 = vmatpush1.msra.mxu0 %v285
    %300 = vmatprep.subr.mxu0 0.0
    %301 = vmatpush1.msra.mxu0 %v290
    %302 = vmatprep.subr.mxu0 0.0
    %303 = vmatpush1.msra.mxu0 0.0
    %304 = vmatprep.subr.mxu0 0.0
    %305 = vmatpush1.msra.mxu0 0.0
    %306 = vmatprep.subr.mxu0 0.0
    %307 = vmatpush1.msra.mxu0 0.0
    %308 = vmatprep.subr.mxu0 0.0
    %309 = vmatpush1.msra.mxu0 0.0
    %310 = vmatprep.subr.mxu0 0.0
    %311 = vmatpush1.msra.mxu0 0.0
    %312 = vmatprep.subr.mxu0 0.0
    %313 = vmatpush1.msra.mxu0 0.0
    %314 = vmatprep.subr.mxu0 0.0
    %315 = vmatpush1.msra.mxu0 0.0
    %316 = vmatprep.subr.mxu0 0.0
    %317 = vmatpush1.msra.mxu0 0.0
    %318 = vmatprep.subr.mxu0 0.0
    %319 = vmatpush1.msra.mxu0 0.0
    %320 = vmatprep.subr.mxu0 0.0
    %321 = vmatpush1.msra.mxu0 0.0
    %322 = vmatprep.subr.mxu0 0.0
    %323 = vmatpush1.msra.mxu0 0.0
    %324 = vmatprep.subr.mxu0 0.0
    %325 = vmatpush1.msra.mxu0 0.0
    %326 = vmatprep.subr.mxu0 0.0
    %327 = vmatpush1.msra.mxu0 0.0
    %328 = vmatprep.subr.mxu0 0.0
    %329 = vmatpush1.msra.mxu0 0.0
    %330 = vmatprep.subr.mxu0 0.0
    %331 = vmatpush1.msra.mxu0 0.0
    %332 = vmatprep.subr.mxu0 0.0
    %333 = vmatpush1.msra.mxu0 0.0
    %334 = vmatprep.subr.mxu0 0.0
    %335 = vmatpush1.msra.mxu0 0.0
    %336 = vmatprep.subr.mxu0 0.0
    %337 = vmatpush1.msra.mxu0 0.0
    %338 = vmatprep.subr.mxu0 0.0
    %339 = vmatpush1.msra.mxu0 0.0
    %340 = vmatprep.subr.mxu0 0.0
    %341 = vmatpush1.msra.mxu0 0.0
    %342 = vmatprep.subr.mxu0 0.0
    %343 = vmatpush1.msra.mxu0 0.0
    %344 = vmatprep.subr.mxu0 0.0
    %345 = vmatpush1.msra.mxu0 0.0
    %346 = vmatprep.subr.mxu0 0.0
    %347 = vmatpush1.msra.mxu0 0.0
    %348 = vmatprep.subr.mxu0 0.0
    %349 = vmatpush1.msra.mxu0 0.0
    %350 = vmatprep.subr.mxu0 0.0
    %351 = vmatpush1.msra.mxu0 0.0
    %352 = vmatprep.subr.mxu0 0.0
    %353 = vmatpush1.msra.mxu0 0.0
    %354 = vmatprep.subr.mxu0 0.0
    %355 = vmatpush1.msra.mxu0 0.0
    %356 = vmatprep.subr.mxu0 0.0
    %357 = vmatpush1.msra.mxu0 0.0
    %358 = vmatprep.subr.mxu0 0.0
    %359 = vmatpush1.msra.mxu0 0.0
    %360 = vmatprep.subr.mxu0 0.0
    %361 = vmatpush1.msra.mxu0 0.0
    %362 = vmatprep.mubr.f32.mxu0 0.0
    %363 = vmatmul.mubr.f32.gmra.mrb[0].mxu0 %v125
    %v364 = vpop.f32.mrb[0].mxu0
    %v365 = vadd.f32 %v297, %v364
    %v366 = vpop.f32.mrb[0].mxu0
    %367 = vmatprep.mubr.f32.mxu0 0.0
    %368 = vmatmul.mubr.f32.gmra.mrb[0].mxu0 %v128
    %v369 = vpop.f32.mrb[0].mxu0
    %v370 = vadd.f32 %v297, %v369
    %v371 = vpop.f32.mrb[0].mxu0
    %372 = vdwg.mxu0
    %v373 = vmax.f32 %v365, 0.0
    %v374 = vmax.f32 %v370, 0.0
    %v375 = vld [vmem:[%s2] sm:$0xff]
    %v377 = vsel %vm123, %v375, 0
    %379 = vmatprep.subr.mxu0 0.0
    %380 = vmatpush1.msra.mxu0 %v373
    %381 = vmatprep.subr.mxu0 0.0
    %382 = vmatpush1.msra.mxu0 %v374
    %383 = vmatprep.subr.mxu0 0.0
    %384 = vmatpush1.msra.mxu0 0.0
    %385 = vmatprep.subr.mxu0 0.0
    %386 = vmatpush1.msra.mxu0 0.0
    %387 = vmatprep.subr.mxu0 0.0
    %388 = vmatpush1.msra.mxu0 0.0
    %389 = vmatprep.subr.mxu0 0.0
    %390 = vmatpush1.msra.mxu0 0.0
    %391 = vmatprep.subr.mxu0 0.0
    %392 = vmatpush1.msra.mxu0 0.0
    %393 = vmatprep.subr.mxu0 0.0
    %394 = vmatpush1.msra.mxu0 0.0
    %395 = vmatprep.subr.mxu0 0.0
    %396 = vmatpush1.msra.mxu0 0.0
    %397 = vmatprep.subr.mxu0 0.0
    %398 = vmatpush1.msra.mxu0 0.0
    %399 = vmatprep.subr.mxu0 0.0
    %400 = vmatpush1.msra.mxu0 0.0
    %401 = vmatprep.subr.mxu0 0.0
    %402 = vmatpush1.msra.mxu0 0.0
    %403 = vmatprep.subr.mxu0 0.0
    %404 = vmatpush1.msra.mxu0 0.0
    %405 = vmatprep.subr.mxu0 0.0
    %406 = vmatpush1.msra.mxu0 0.0
    %407 = vmatprep.subr.mxu0 0.0
    %408 = vmatpush1.msra.mxu0 0.0
    %409 = vmatprep.subr.mxu0 0.0
    %410 = vmatpush1.msra.mxu0 0.0
    %411 = vmatprep.subr.mxu0 0.0
    %412 = vmatpush1.msra.mxu0 0.0
    %413 = vmatprep.subr.mxu0 0.0
    %414 = vmatpush1.msra.mxu0 0.0
    %415 = vmatprep.subr.mxu0 0.0
    %416 = vmatpush1.msra.mxu0 0.0
    %417 = vmatprep.subr.mxu0 0.0
    %418 = vmatpush1.msra.mxu0 0.0
    %419 = vmatprep.subr.mxu0 0.0
    %420 = vmatpush1.msra.mxu0 0.0
    %421 = vmatprep.subr.mxu0 0.0
    %422 = vmatpush1.msra.mxu0 0.0
    %423 = vmatprep.subr.mxu0 0.0
    %424 = vmatpush1.msra.mxu0 0.0
    %425 = vmatprep.subr.mxu0 0.0
    %426 = vmatpush1.msra.mxu0 0.0
    %427 = vmatprep.subr.mxu0 0.0
    %428 = vmatpush1.msra.mxu0 0.0
    %429 = vmatprep.subr.mxu0 0.0
    %430 = vmatpush1.msra.mxu0 0.0
    %431 = vmatprep.subr.mxu0 0.0
    %432 = vmatpush1.msra.mxu0 0.0
    %433 = vmatprep.subr.mxu0 0.0
    %434 = vmatpush1.msra.mxu0 0.0
    %435 = vmatprep.subr.mxu0 0.0
    %436 = vmatpush1.msra.mxu0 0.0
    %437 = vmatprep.subr.mxu0 0.0
    %438 = vmatpush1.msra.mxu0 0.0
    %439 = vmatprep.subr.mxu0 0.0
    %440 = vmatpush1.msra.mxu0 0.0
    %441 = vmatprep.subr.mxu0 0.0
    %442 = vmatpush1.msra.mxu0 0.0
    %443 = vmatprep.mubr.f32.mxu0 0.0
    %444 = vmatmul.mubr.f32.gmra.mrb[0].mxu0 %v377
    %v445 = vpop.f32.mrb[0].mxu0
    %v446 = vadd.f32 0.0, %v445
    %v447 = vpop.f32.mrb[0].mxu0
    %448 = vdwg.mxu0
    %v449 = vld [vmem:[#allocation2 + $0x38] sm:$0xff]
    %v450 = vld [vmem:[#allocation2 + $0x40] sm:$0xff]
    %v451 = vld [vmem:[#allocation2 + $0x48] sm:$0xff]
    %v452 = vld [vmem:[#allocation2 + $0x50] sm:$0xff]
    %v453 = vld [vmem:[#allocation2 + $0x58] sm:$0x1]
    %v454 = vlaneseq
    %v455 = vshrl.u32 %v454, 7
    %v456 = vsub.s32 0, %v455
    %v457 = vrot.slane %v453, %v456
    %v459 = vsel %vm211, %v446, 0
    %461 = vmatprep.subr.mxu0 0.0
    %462 = vmatpush1.msra.mxu0 %v449
    %463 = vmatprep.subr.mxu0 0.0
    %464 = vmatpush1.msra.mxu0 %v450
    %465 = vmatprep.subr.mxu0 0.0
    %466 = vmatpush1.msra.mxu0 %v451
    %467 = vmatprep.subr.mxu0 0.0
    %468 = vmatpush1.msra.mxu0 %v452
    %469 = vmatprep.subr.mxu0 0.0
    %470 = vmatpush1.msra.mxu0 0.0
    %471 = vmatprep.subr.mxu0 0.0
    %472 = vmatpush1.msra.mxu0 0.0
    %473 = vmatprep.subr.mxu0 0.0
    %474 = vmatpush1.msra.mxu0 0.0
    %475 = vmatprep.subr.mxu0 0.0
    %476 = vmatpush1.msra.mxu0 0.0
    %477 = vmatprep.subr.mxu0 0.0
    %478 = vmatpush1.msra.mxu0 0.0
    %479 = vmatprep.subr.mxu0 0.0
    %480 = vmatpush1.msra.mxu0 0.0
    %481 = vmatprep.subr.mxu0 0.0
    %482 = vmatpush1.msra.mxu0 0.0
    %483 = vmatprep.subr.mxu0 0.0
    %484 = vmatpush1.msra.mxu0 0.0
    %485 = vmatprep.subr.mxu0 0.0
    %486 = vmatpush1.msra.mxu0 0.0
    %487 = vmatprep.subr.mxu0 0.0
    %488 = vmatpush1.msra.mxu0 0.0
    %489 = vmatprep.subr.mxu0 0.0
    %490 = vmatpush1.msra.mxu0 0.0
    %491 = vmatprep.subr.mxu0 0.0
    %492 = vmatpush1.msra.mxu0 0.0
    %493 = vmatprep.subr.mxu0 0.0
    %494 = vmatpush1.msra.mxu0 0.0
    %495 = vmatprep.subr.mxu0 0.0
    %496 = vmatpush1.msra.mxu0 0.0
    %497 = vmatprep.subr.mxu0 0.0
    %498 = vmatpush1.msra.mxu0 0.0
    %499 = vmatprep.subr.mxu0 0.0
    %500 = vmatpush1.msra.mxu0 0.0
    %501 = vmatprep.subr.mxu0 0.0
    %502 = vmatpush1.msra.mxu0 0.0
    %503 = vmatprep.subr.mxu0 0.0
    %504 = vmatpush1.msra.mxu0 0.0
    %505 = vmatprep.subr.mxu0 0.0
    %506 = vmatpush1.msra.mxu0 0.0
    %507 = vmatprep.subr.mxu0 0.0
    %508 = vmatpush1.msra.mxu0 0.0
    %509 = vmatprep.subr.mxu0 0.0
    %510 = vmatpush1.msra.mxu0 0.0
    %511 = vmatprep.subr.mxu0 0.0
    %512 = vmatpush1.msra.mxu0 0.0
    %513 = vmatprep.subr.mxu0 0.0
    %514 = vmatpush1.msra.mxu0 0.0
    %515 = vmatprep.subr.mxu0 0.0
    %516 = vmatpush1.msra.mxu0 0.0
    %517 = vmatprep.subr.mxu0 0.0
    %518 = vmatpush1.msra.mxu0 0.0
    %519 = vmatprep.subr.mxu0 0.0
    %520 = vmatpush1.msra.mxu0 0.0
    %521 = vmatprep.subr.mxu0 0.0
    %522 = vmatpush1.msra.mxu0 0.0
    %523 = vmatprep.subr.mxu0 0.0
    %524 = vmatpush1.msra.mxu0 0.0
    %525 = vmatprep.mubr.f32.mxu0 0.0
    %526 = vmatmul.mubr.f32.gmra.mrb[0].mxu0 %v459
    %v527 = vpop.f32.mrb[0].mxu0
    %v528 = vadd.f32 %v457, %v527
    %v529 = vpop.f32.mrb[0].mxu0
    %530 = vdwg.mxu0
    %v531 = vmax.f32 %v528, 0.0
    %v532 = vld [vmem:[#allocation2 + $0x60] sm:$0xff]
    %v533 = vld [vmem:[#allocation2 + $0x68] sm:$0xff]
    %v534 = vld [vmem:[#allocation2 + $0x70] sm:$0xff]
    %v535 = vld [vmem:[#allocation2 + $0x78] sm:$0xff]
    %v536 = vld [vmem:[#allocation2 + $0x80] sm:$0x1]
    %v537 = vlaneseq
    %v538 = vshrl.u32 %v537, 7
    %v539 = vsub.s32 0, %v538
    %v540 = vrot.slane %v536, %v539
    %v542 = vsel %vm211, %v531, 0
    %544 = vmatprep.subr.mxu0 0.0
    %545 = vmatpush1.msra.mxu0 %v532
    %546 = vmatprep.subr.mxu0 0.0
    %547 = vmatpush1.msra.mxu0 %v533
    %548 = vmatprep.subr.mxu0 0.0
    %549 = vmatpush1.msra.mxu0 %v534
    %550 = vmatprep.subr.mxu0 0.0
    %551 = vmatpush1.msra.mxu0 %v535
    %552 = vmatprep.subr.mxu0 0.0
    %553 = vmatpush1.msra.mxu0 0.0
    %554 = vmatprep.subr.mxu0 0.0
    %555 = vmatpush1.msra.mxu0 0.0
    %556 = vmatprep.subr.mxu0 0.0
    %557 = vmatpush1.msra.mxu0 0.0
    %558 = vmatprep.subr.mxu0 0.0
    %559 = vmatpush1.msra.mxu0 0.0
    %560 = vmatprep.subr.mxu0 0.0
    %561 = vmatpush1.msra.mxu0 0.0
    %562 = vmatprep.subr.mxu0 0.0
    %563 = vmatpush1.msra.mxu0 0.0
    %564 = vmatprep.subr.mxu0 0.0
    %565 = vmatpush1.msra.mxu0 0.0
    %566 = vmatprep.subr.mxu0 0.0
    %567 = vmatpush1.msra.mxu0 0.0
    %568 = vmatprep.subr.mxu0 0.0
    %569 = vmatpush1.msra.mxu0 0.0
    %570 = vmatprep.subr.mxu0 0.0
    %571 = vmatpush1.msra.mxu0 0.0
    %572 = vmatprep.subr.mxu0 0.0
    %573 = vmatpush1.msra.mxu0 0.0
    %574 = vmatprep.subr.mxu0 0.0
    %575 = vmatpush1.msra.mxu0 0.0
    %576 = vmatprep.subr.mxu0 0.0
    %577 = vmatpush1.msra.mxu0 0.0
    %578 = vmatprep.subr.mxu0 0.0
    %579 = vmatpush1.msra.mxu0 0.0
    %580 = vmatprep.subr.mxu0 0.0
    %581 = vmatpush1.msra.mxu0 0.0
    %582 = vmatprep.subr.mxu0 0.0
    %583 = vmatpush1.msra.mxu0 0.0
    %584 = vmatprep.subr.mxu0 0.0
    %585 = vmatpush1.msra.mxu0 0.0
    %586 = vmatprep.subr.mxu0 0.0
    %587 = vmatpush1.msra.mxu0 0.0
    %588 = vmatprep.subr.mxu0 0.0
    %589 = vmatpush1.msra.mxu0 0.0
    %590 = vmatprep.subr.mxu0 0.0
    %591 = vmatpush1.msra.mxu0 0.0
    %592 = vmatprep.subr.mxu0 0.0
    %593 = vmatpush1.msra.mxu0 0.0
    %594 = vmatprep.subr.mxu0 0.0
    %595 = vmatpush1.msra.mxu0 0.0
    %596 = vmatprep.subr.mxu0 0.0
    %597 = vmatpush1.msra.mxu0 0.0
    %598 = vmatprep.subr.mxu0 0.0
    %599 = vmatpush1.msra.mxu0 0.0
    %600 = vmatprep.subr.mxu0 0.0
    %601 = vmatpush1.msra.mxu0 0.0
    %602 = vmatprep.subr.mxu0 0.0
    %603 = vmatpush1.msra.mxu0 0.0
    %604 = vmatprep.subr.mxu0 0.0
    %605 = vmatpush1.msra.mxu0 0.0
    %606 = vmatprep.subr.mxu0 0.0
    %607 = vmatpush1.msra.mxu0 0.0
    %608 = vmatprep.mubr.f32.mxu0 0.0
    %609 = vmatmul.mubr.f32.gmra.mrb[0].mxu0 %v542
    %v610 = vpop.f32.mrb[0].mxu0
    %v611 = vadd.f32 %v540, %v610
    %v612 = vpop.f32.mrb[0].mxu0
    %613 = vdwg.mxu0
    %614 = vst [vmem:[%s4] sm:$0xff] %v611
    // Predicated region
    $region22: #{graph_encoder.1} parent=1 // pred_check
      _
    $region23: #{graph_encoder.1} parent=1 // pred_check_branch
      %616 = sbr.rel (0) target = $region25
    $region24: #{graph_encoder.1} parent=1 // pred_region
      _
    $region25: #{graph_encoder.1} parent=1 // pred_fallthru
      _
    // Predicated region
    $region26: #{graph_encoder.1} parent=1 // pred_check
      _
    $region27: #{graph_encoder.1} parent=1 // pred_check_branch
      %618 = sbr.rel (0) target = $region29
    $region28: #{graph_encoder.1} parent=1 // pred_region
      _
    $region29: #{graph_encoder.1} parent=1 // pred_fallthru
      _
    %619 = vsyncpa [#allocation3], 1

</llo_original>
